<compile_context>
chip_gen: v7x
topology: tpu7x:2x2x1
jax: 0.10.0
libtpu: 0.0.40
codegen_flags: <defaults>
</compile_context>

<pallas_src>
from functools import partial

import jax
import jax.numpy as jnp
import numpy as np
from jax.experimental import pallas as pl
from jax.experimental.pallas import tpu as pltpu

NUM_CLASSES = 4  # fixed rating scale 0..3
LANES = 128
# TODO(synk): sklearn infers the label set dynamically from the data at runtime;
# a fixed consecutive class set [0, NUM_CLASSES) is used here (equivalent
# whenever every class appears in the data, as in the examples below).


def _qk_moments_kernel(nrows_ref, out_ref, tgt_ref, mom_ref, *, tile_rows):
    """Per-shard streaming moment sums.

    mom_ref: (5, 8, 128) f32 output block (one per shard) holding per-lane
             partial sums of [pred, tgt, pred^2, tgt^2, pred*tgt].
    """
    s = pl.program_id(0)          # shard ("parallel") axis
    i = pl.program_id(1)          # reduction ("arbitrary") axis

    @pl.when(i == 0)
    def _init():
        mom_ref[...] = jnp.zeros_like(mom_ref)

    cmax = float(NUM_CLASSES - 1)
    # Native-dtype DMA; upcast to f32 right after the load.
    pred = jnp.clip(jnp.round(out_ref[...].astype(jnp.float32)), 0.0, cmax)
    # Spec only rounds `output`; targets are integer labels in [0, C-1] by
    # caller contract, so they stream through untouched (saves VALU ops).
    tgt = tgt_ref[...].astype(jnp.float32)

    def accumulate(p, t):
        def lane_partial(x):
            # (tile_rows, 128) -> (8, 128) via sublane-aligned regrouping + VPU adds.
            return jnp.sum(x.reshape(tile_rows // 8, 8, LANES), axis=0)

        mom_ref[0] += lane_partial(p)
        mom_ref[1] += lane_partial(t)
        mom_ref[2] += lane_partial(p * p)
        mom_ref[3] += lane_partial(t * t)
        mom_ref[4] += lane_partial(p * t)

    rows_total = nrows_ref[0]
    row0 = (s * pl.num_programs(1) + i) * tile_rows
    tile_is_full = row0 + tile_rows <= rows_total

    @pl.when(tile_is_full)
    def _fast():                  # hot path: no masking work at all
        accumulate(pred, tgt)

    @pl.when(jnp.logical_not(tile_is_full))
    def _ragged():                # boundary / out-of-range tile: zero invalid rows
        rid = row0 + jax.lax.broadcasted_iota(jnp.int32, (tile_rows, 1), 0)
        valid = rid < rows_total
        accumulate(jnp.where(valid, pred, 0.0), jnp.where(valid, tgt, 0.0))


def quadratic_kappa(output, target, tile_rows=2048, num_shards=2):
    """output, target: same-shape arrays of (possibly non-integer) labels.

    Returns the quadratic-weighted Cohen's kappa of (round(output), target)
    as a scalar f32.  Inputs may be f32 or bf16 (streamed in native dtype).
    """
    assert output.shape == target.shape
    n_valid = int(output.size)
    assert n_valid > 0

    out_flat = output.reshape(-1)
    tgt_flat = target.reshape(-1)
    rem = n_valid % LANES
    if rem:
        # TODO(synk): element counts that are not a multiple of 128 still pay a
        # single pad copy (only to the next 128 boundary); multiples of 128
        # stream with zero extra HBM traffic.
        pad = LANES - rem
        out_flat = jnp.pad(out_flat, (0, pad))
        tgt_flat = jnp.pad(tgt_flat, (0, pad))
    rows = out_flat.shape[0] // LANES
    out2 = out_flat.reshape(rows, LANES)     # free (bitcast) reshape
    tgt2 = tgt_flat.reshape(rows, LANES)

    # Sublane-aligned tile (multiple of 16 so bf16 inputs tile cleanly too).
    tile_rows = int(tile_rows)
    tile_rows = max(16, min(tile_rows, ((rows + 15) // 16) * 16))
    tile_rows = ((tile_rows + 15) // 16) * 16
    num_tiles = -(-rows // tile_rows)
    num_shards = max(1, min(int(num_shards), num_tiles))
    steps = -(-num_tiles // num_shards)      # reduction steps per shard

    def in_map(s, i, nrows_ref):
        # Clamp so the DMA never starts past the array; logically out-of-range
        # tiles are fully masked in-kernel anyway.
        return (jnp.minimum(s * steps + i, num_tiles - 1), 0)

    moments = pl.pallas_call(
        partial(_qk_moments_kernel, tile_rows=tile_rows),
        out_shape=jax.ShapeDtypeStruct((num_shards, 5, 8, LANES), jnp.float32),
        grid_spec=pltpu.PrefetchScalarGridSpec(
            num_scalar_prefetch=1,
            grid=(num_shards, steps),
            in_specs=[
                pl.BlockSpec((tile_rows, LANES), in_map),
                pl.BlockSpec((tile_rows, LANES), in_map),
            ],
            out_specs=pl.BlockSpec((None, 5, 8, LANES),
                                   lambda s, i, nrows_ref: (s, 0, 0, 0)),
        ),
        compiler_params=pltpu.CompilerParams(
            dimension_semantics=("parallel", "arbitrary")),
    )(jnp.array([rows], dtype=jnp.int32), out2, tgt2)

    # Tiny epilogue: combine per-shard per-lane partials and finish the scalar
    # algebra (5 useful numbers per shard).  f32 partial sums are exact while
    # each lane's sums stay below 2^24 (N up to ~1e9 elements).
    m = jnp.sum(moments, axis=(0, 2, 3))     # (5,)
    s_p, s_t, s_pp, s_tt, s_pt = m[0], m[1], m[2], m[3], m[4]
    n = jnp.float32(n_valid)
    num = n * (s_pp + s_tt - 2.0 * s_pt)
    den = n * (s_pp + s_tt) - 2.0 * s_p * s_t
    # TODO(synk): den == 0 (constant, identical pred/target) is degenerate;
    # sklearn emits NaN with a warning, we return 1.0.
    return jnp.where(den == 0.0, jnp.float32(1.0), 1.0 - num / den)


def _kappa_reference_numpy(output, target, num_classes=NUM_CLASSES):
    pred = np.clip(np.rint(np.asarray(output, dtype=np.float64)), 0, num_classes - 1).astype(int)
    tgt = np.clip(np.rint(np.asarray(target, dtype=np.float64)), 0, num_classes - 1).astype(int)
    pred, tgt = pred.ravel(), tgt.ravel()
    n = pred.size
    O = np.zeros((num_classes, num_classes))
    np.add.at(O, (pred, tgt), 1.0)
    i, j = np.meshgrid(np.arange(num_classes), np.arange(num_classes), indexing="ij")
    W = (i - j) ** 2 / float((num_classes - 1) ** 2)
    E = np.outer(O.sum(1), O.sum(0)) / n
    return 1.0 - (W * O).sum() / (W * E).sum()


if __name__ == "__main__":
    key = jax.random.PRNGKey(0)
    k1, k2, k3, k4, k5, k6 = jax.random.split(key, 6)

    # Small flat sample set: 2 * 128 = 256 "predictions" and "targets".
    output = jax.random.uniform(k1, (2, 128), minval=0.0, maxval=float(NUM_CLASSES - 1))
    target = jax.random.randint(k2, (2, 128), 0, NUM_CLASSES).astype(jnp.float32)
    kappa = jax.block_until_ready(quadratic_kappa(output, target))
    ref = _kappa_reference_numpy(np.array(output), np.array(target))
    assert abs(float(kappa) - ref) < 1e-4, (float(kappa), ref)

    # Multi-tile path with a ragged last tile + an out-of-range shard tile
    # (exercises the in-kernel row masking and the 2-way shard accumulator).
    output2 = jax.random.uniform(k3, (70, 128), minval=0.0, maxval=float(NUM_CLASSES - 1))
    target2 = jax.random.randint(k4, (70, 128), 0, NUM_CLASSES).astype(jnp.float32)
    kappa2 = jax.block_until_ready(quadratic_kappa(output2, target2, tile_rows=16))
    ref2 = _kappa_reference_numpy(np.array(output2), np.array(target2))
    assert abs(float(kappa2) - ref2) < 1e-4, (float(kappa2), ref2)

    # Ragged element count (not a multiple of 128): small tail pad + row mask.
    output3 = jax.random.uniform(k5, (9, 100), minval=0.0, maxval=float(NUM_CLASSES - 1))
    target3 = jax.random.randint(k6, (9, 100), 0, NUM_CLASSES).astype(jnp.float32)
    kappa3 = jax.block_until_ready(quadratic_kappa(output3, target3))
    ref3 = _kappa_reference_numpy(np.array(output3), np.array(target3))
    assert abs(float(kappa3) - ref3) < 1e-4, (float(kappa3), ref3)

    print("KERNEL_OK")
</pallas_src>

<mosaic_0001>
module attributes {stable_mosaic.version = 11 : i64} {
  func.func @_qk_moments_kernel(%arg0: i32, %arg1: i32, %arg2: memref<1xi32, #tpu.memory_space<smem>>, %arg3: memref<16x128xf32, #tpu.memory_space<vmem>>, %arg4: memref<16x128xf32, #tpu.memory_space<vmem>>, %arg5: memref<1x5x8x128xf32, #tpu.memory_space<vmem>>) attributes {dimension_semantics = [#tpu.dimension_semantics<parallel>, #tpu.dimension_semantics<arbitrary>], iteration_bounds = array<i64: 1, 1>, scalar_prefetch = 1 : i64, scratch_operands = 0 : i64, tpu.core_type = #tpu.core_type<tc>, window_params = [{transform_indices = @transform_0, window_bounds = array<i64: 16, 128>}, {transform_indices = @transform_1, window_bounds = array<i64: 16, 128>}, {transform_indices = @transform_2, window_bounds = array<i64: 1, 5, 8, 128>}]} {
    %c0_i32 = arith.constant 0 : i32
    %0 = arith.cmpi eq, %arg1, %c0_i32 : i32
    %1 = arith.extui %0 : i1 to i32
    %c0_i32_0 = arith.constant 0 : i32
    %2 = arith.cmpi ne, %1, %c0_i32_0 : i32
    scf.if %2 {
      %cst_9 = arith.constant 0.000000e+00 : f32
      %21 = vector.broadcast %cst_9 : f32 to vector<5x8x128xf32>
      %c0_10 = arith.constant 0 : index
      %c0_11 = arith.constant 0 : index
      %c0_12 = arith.constant 0 : index
      %c0_13 = arith.constant 0 : index
      %22 = vector.load %arg5[%c0_10, %c0_11, %c0_12, %c0_13] : memref<1x5x8x128xf32, #tpu.memory_space<vmem>>, vector<1x5x8x128xf32>
      %23 = vector.shape_cast %22 : vector<1x5x8x128xf32> to vector<5x8x128xf32>
      %24 = vector.shape_cast %21 : vector<5x8x128xf32> to vector<1x5x8x128xf32>
      tpu.vector_store %arg5[%c0_10, %c0_11, %c0_12, %c0_13], %24 {strides = array<i32>} : memref<1x5x8x128xf32, #tpu.memory_space<vmem>>, vector<1x5x8x128xf32>,
    } else {
    }
    %c0 = arith.constant 0 : index
    %c0_1 = arith.constant 0 : index
    %3 = vector.load %arg3[%c0, %c0_1] : memref<16x128xf32, #tpu.memory_space<vmem>>, vector<16x128xf32>
    %4 = math.roundeven %3 : vector<16x128xf32>
    %cst = arith.constant 0.000000e+00 : f32
    %cst_2 = arith.constant 3.000000e+00 : f32
    %5 = vector.broadcast %cst : f32 to vector<16x128xf32>
    %6 = arith.maximumf %5, %4 : vector<16x128xf32>
    %7 = vector.broadcast %cst_2 : f32 to vector<16x128xf32>
    %8 = arith.minimumf %7, %6 : vector<16x128xf32>
    %c0_3 = arith.constant 0 : index
    %c0_4 = arith.constant 0 : index
    %9 = vector.load %arg4[%c0_3, %c0_4] : memref<16x128xf32, #tpu.memory_space<vmem>>, vector<16x128xf32>
    %c0_5 = arith.constant 0 : index
    %10 = memref.load %arg2[%c0_5] : memref<1xi32, #tpu.memory_space<smem>>
    %c1_i32 = arith.constant 1 : i32
    %11 = arith.muli %arg0, %c1_i32 : i32
    %12 = arith.addi %11, %arg1 : i32
    %c16_i32 = arith.constant 16 : i32
    %13 = arith.muli %12, %c16_i32 : i32
    %c16_i32_6 = arith.constant 16 : i32
    %14 = arith.addi %13, %c16_i32_6 : i32
    %15 = arith.cmpi sle, %14, %10 : i32
    %16 = arith.extui %15 : i1 to i32
    %c0_i32_7 = arith.constant 0 : i32
    %17 = arith.cmpi ne, %16, %c0_i32_7 : i32
    scf.if %17 {
      %c0_9 = arith.constant 0 : index
      %c0_10 = arith.constant 0 : index
      %c0_11 = arith.constant 0 : index
      %c0_12 = arith.constant 0 : index
      %21 = vector.load %arg5[%c0_9, %c0_10, %c0_11, %c0_12] : memref<1x5x8x128xf32, #tpu.memory_space<vmem>>, vector<1x1x8x128xf32>
      %22 = vector.shape_cast %21 : vector<1x1x8x128xf32> to vector<8x128xf32>
      %23 = vector.shape_cast %8 : vector<16x128xf32> to vector<2x8x128xf32>
      %cst_13 = arith.constant dense<0.000000e+00> : vector<8x128xf32>
      %24 = vector.multi_reduction <add>, %23, %cst_13 [0] : vector<2x8x128xf32> to vector<8x128xf32>
      %25 = arith.addf %22, %24 : vector<8x128xf32>
      %c0_14 = arith.constant 0 : index
      %c0_15 = arith.constant 0 : index
      %c0_16 = arith.constant 0 : index
      %c0_17 = arith.constant 0 : index
      %26 = vector.load %arg5[%c0_14, %c0_15, %c0_16, %c0_17] : memref<1x5x8x128xf32, #tpu.memory_space<vmem>>, vector<1x1x8x128xf32>
      %27 = vector.shape_cast %26 : vector<1x1x8x128xf32> to vector<8x128xf32>
      %28 = vector.shape_cast %25 : vector<8x128xf32> to vector<1x1x8x128xf32>
      tpu.vector_store %arg5[%c0_14, %c0_15, %c0_16, %c0_17], %28 {strides = array<i32>} : memref<1x5x8x128xf32, #tpu.memory_space<vmem>>, vector<1x1x8x128xf32>,
      %c0_18 = arith.constant 0 : index
      %c1 = arith.constant 1 : index
      %c0_19 = arith.constant 0 : index
      %c0_20 = arith.constant 0 : index
      %29 = vector.load %arg5[%c0_18, %c1, %c0_19, %c0_20] : memref<1x5x8x128xf32, #tpu.memory_space<vmem>>, vector<1x1x8x128xf32>
      %30 = vector.shape_cast %29 : vector<1x1x8x128xf32> to vector<8x128xf32>
      %31 = vector.shape_cast %9 : vector<16x128xf32> to vector<2x8x128xf32>
      %cst_21 = arith.constant dense<0.000000e+00> : vector<8x128xf32>
      %32 = vector.multi_reduction <add>, %31, %cst_21 [0] : vector<2x8x128xf32> to vector<8x128xf32>
      %33 = arith.addf %30, %32 : vector<8x128xf32>
      %c0_22 = arith.constant 0 : index
      %c1_23 = arith.constant 1 : index
      %c0_24 = arith.constant 0 : index
      %c0_25 = arith.constant 0 : index
      %34 = vector.load %arg5[%c0_22, %c1_23, %c0_24, %c0_25] : memref<1x5x8x128xf32, #tpu.memory_space<vmem>>, vector<1x1x8x128xf32>
      %35 = vector.shape_cast %34 : vector<1x1x8x128xf32> to vector<8x128xf32>
      %36 = vector.shape_cast %33 : vector<8x128xf32> to vector<1x1x8x128xf32>
      tpu.vector_store %arg5[%c0_22, %c1_23, %c0_24, %c0_25], %36 {strides = array<i32>} : memref<1x5x8x128xf32, #tpu.memory_space<vmem>>, vector<1x1x8x128xf32>,
      %c0_26 = arith.constant 0 : index
      %c2 = arith.constant 2 : index
      %c0_27 = arith.constant 0 : index
      %c0_28 = arith.constant 0 : index
      %37 = vector.load %arg5[%c0_26, %c2, %c0_27, %c0_28] : memref<1x5x8x128xf32, #tpu.memory_space<vmem>>, vector<1x1x8x128xf32>
      %38 = vector.shape_cast %37 : vector<1x1x8x128xf32> to vector<8x128xf32>
      %39 = arith.mulf %8, %8 : vector<16x128xf32>
      %40 = vector.shape_cast %39 : vector<16x128xf32> to vector<2x8x128xf32>
      %cst_29 = arith.constant dense<0.000000e+00> : vector<8x128xf32>
      %41 = vector.multi_reduction <add>, %40, %cst_29 [0] : vector<2x8x128xf32> to vector<8x128xf32>
      %42 = arith.addf %38, %41 : vector<8x128xf32>
      %c0_30 = arith.constant 0 : index
      %c2_31 = arith.constant 2 : index
      %c0_32 = arith.constant 0 : index
      %c0_33 = arith.constant 0 : index
      %43 = vector.load %arg5[%c0_30, %c2_31, %c0_32, %c0_33] : memref<1x5x8x128xf32, #tpu.memory_space<vmem>>, vector<1x1x8x128xf32>
      %44 = vector.shape_cast %43 : vector<1x1x8x128xf32> to vector<8x128xf32>
      %45 = vector.shape_cast %42 : vector<8x128xf32> to vector<1x1x8x128xf32>
      tpu.vector_store %arg5[%c0_30, %c2_31, %c0_32, %c0_33], %45 {strides = array<i32>} : memref<1x5x8x128xf32, #tpu.memory_space<vmem>>, vector<1x1x8x128xf32>,
      %c0_34 = arith.constant 0 : index
      %c3 = arith.constant 3 : index
      %c0_35 = arith.constant 0 : index
      %c0_36 = arith.constant 0 : index
      %46 = vector.load %arg5[%c0_34, %c3, %c0_35, %c0_36] : memref<1x5x8x128xf32, #tpu.memory_space<vmem>>, vector<1x1x8x128xf32>
      %47 = vector.shape_cast %46 : vector<1x1x8x128xf32> to vector<8x128xf32>
      %48 = arith.mulf %9, %9 : vector<16x128xf32>
      %49 = vector.shape_cast %48 : vector<16x128xf32> to vector<2x8x128xf32>
      %cst_37 = arith.constant dense<0.000000e+00> : vector<8x128xf32>
      %50 = vector.multi_reduction <add>, %49, %cst_37 [0] : vector<2x8x128xf32> to vector<8x128xf32>
      %51 = arith.addf %47, %50 : vector<8x128xf32>
      %c0_38 = arith.constant 0 : index
      %c3_39 = arith.constant 3 : index
      %c0_40 = arith.constant 0 : index
      %c0_41 = arith.constant 0 : index
      %52 = vector.load %arg5[%c0_38, %c3_39, %c0_40, %c0_41] : memref<1x5x8x128xf32, #tpu.memory_space<vmem>>, vector<1x1x8x128xf32>
      %53 = vector.shape_cast %52 : vector<1x1x8x128xf32> to vector<8x128xf32>
      %54 = vector.shape_cast %51 : vector<8x128xf32> to vector<1x1x8x128xf32>
      tpu.vector_store %arg5[%c0_38, %c3_39, %c0_40, %c0_41], %54 {strides = array<i32>} : memref<1x5x8x128xf32, #tpu.memory_space<vmem>>, vector<1x1x8x128xf32>,
      %c0_42 = arith.constant 0 : index
      %c4 = arith.constant 4 : index
      %c0_43 = arith.constant 0 : index
      %c0_44 = arith.constant 0 : index
      %55 = vector.load %arg5[%c0_42, %c4, %c0_43, %c0_44] : memref<1x5x8x128xf32, #tpu.memory_space<vmem>>, vector<1x1x8x128xf32>
      %56 = vector.shape_cast %55 : vector<1x1x8x128xf32> to vector<8x128xf32>
      %57 = arith.mulf %8, %9 : vector<16x128xf32>
      %58 = vector.shape_cast %57 : vector<16x128xf32> to vector<2x8x128xf32>
      %cst_45 = arith.constant dense<0.000000e+00> : vector<8x128xf32>
      %59 = vector.multi_reduction <add>, %58, %cst_45 [0] : vector<2x8x128xf32> to vector<8x128xf32>
      %60 = arith.addf %56, %59 : vector<8x128xf32>
      %c0_46 = arith.constant 0 : index
      %c4_47 = arith.constant 4 : index
      %c0_48 = arith.constant 0 : index
      %c0_49 = arith.constant 0 : index
      %61 = vector.load %arg5[%c0_46, %c4_47, %c0_48, %c0_49] : memref<1x5x8x128xf32, #tpu.memory_space<vmem>>, vector<1x1x8x128xf32>
      %62 = vector.shape_cast %61 : vector<1x1x8x128xf32> to vector<8x128xf32>
      %63 = vector.shape_cast %60 : vector<8x128xf32> to vector<1x1x8x128xf32>
      tpu.vector_store %arg5[%c0_46, %c4_47, %c0_48, %c0_49], %63 {strides = array<i32>} : memref<1x5x8x128xf32, #tpu.memory_space<vmem>>, vector<1x1x8x128xf32>,
    } else {
    }
    %true = arith.constant true
    %18 = arith.xori %15, %true : i1
    %19 = arith.extui %18 : i1 to i32
    %c0_i32_8 = arith.constant 0 : i32
    %20 = arith.cmpi ne, %19, %c0_i32_8 : i32
    scf.if %20 {
      %21 = tpu.iota {dimensions = array<i32: 0>} : vector<16x1xi32>
      %22 = vector.broadcast %13 : i32 to vector<16x1xi32>
      %23 = arith.addi %22, %21 : vector<16x1xi32>
      %24 = vector.broadcast %10 : i32 to vector<16x1xi32>
      %25 = arith.cmpi slt, %23, %24 : vector<16x1xi32>
      %cst_9 = arith.constant 0.000000e+00 : f32
      %26 = vector.shape_cast %25 : vector<16x1xi1> to vector<16x1xi1>
      %27 = vector.broadcast %26 : vector<16x1xi1> to vector<16x128xi1>
      %28 = vector.broadcast %cst_9 : f32 to vector<16x128xf32>
      %29 = arith.select %27, %8, %28 : vector<16x128xi1>, vector<16x128xf32>
      %cst_10 = arith.constant 0.000000e+00 : f32
      %30 = vector.shape_cast %25 : vector<16x1xi1> to vector<16x1xi1>
      %31 = vector.broadcast %30 : vector<16x1xi1> to vector<16x128xi1>
      %32 = vector.broadcast %cst_10 : f32 to vector<16x128xf32>
      %33 = arith.select %31, %9, %32 : vector<16x128xi1>, vector<16x128xf32>
      %c0_11 = arith.constant 0 : index
      %c0_12 = arith.constant 0 : index
      %c0_13 = arith.constant 0 : index
      %c0_14 = arith.constant 0 : index
      %34 = vector.load %arg5[%c0_11, %c0_12, %c0_13, %c0_14] : memref<1x5x8x128xf32, #tpu.memory_space<vmem>>, vector<1x1x8x128xf32>
      %35 = vector.shape_cast %34 : vector<1x1x8x128xf32> to vector<8x128xf32>
      %36 = vector.shape_cast %29 : vector<16x128xf32> to vector<2x8x128xf32>
      %cst_15 = arith.constant dense<0.000000e+00> : vector<8x128xf32>
      %37 = vector.multi_reduction <add>, %36, %cst_15 [0] : vector<2x8x128xf32> to vector<8x128xf32>
      %38 = arith.addf %35, %37 : vector<8x128xf32>
      %c0_16 = arith.constant 0 : index
      %c0_17 = arith.constant 0 : index
      %c0_18 = arith.constant 0 : index
      %c0_19 = arith.constant 0 : index
      %39 = vector.load %arg5[%c0_16, %c0_17, %c0_18, %c0_19] : memref<1x5x8x128xf32, #tpu.memory_space<vmem>>, vector<1x1x8x128xf32>
      %40 = vector.shape_cast %39 : vector<1x1x8x128xf32> to vector<8x128xf32>
      %41 = vector.shape_cast %38 : vector<8x128xf32> to vector<1x1x8x128xf32>
      tpu.vector_store %arg5[%c0_16, %c0_17, %c0_18, %c0_19], %41 {strides = array<i32>} : memref<1x5x8x128xf32, #tpu.memory_space<vmem>>, vector<1x1x8x128xf32>,
      %c0_20 = arith.constant 0 : index
      %c1 = arith.constant 1 : index
      %c0_21 = arith.constant 0 : index
      %c0_22 = arith.constant 0 : index
      %42 = vector.load %arg5[%c0_20, %c1, %c0_21, %c0_22] : memref<1x5x8x128xf32, #tpu.memory_space<vmem>>, vector<1x1x8x128xf32>
      %43 = vector.shape_cast %42 : vector<1x1x8x128xf32> to vector<8x128xf32>
      %44 = vector.shape_cast %33 : vector<16x128xf32> to vector<2x8x128xf32>
      %cst_23 = arith.constant dense<0.000000e+00> : vector<8x128xf32>
      %45 = vector.multi_reduction <add>, %44, %cst_23 [0] : vector<2x8x128xf32> to vector<8x128xf32>
      %46 = arith.addf %43, %45 : vector<8x128xf32>
      %c0_24 = arith.constant 0 : index
      %c1_25 = arith.constant 1 : index
      %c0_26 = arith.constant 0 : index
      %c0_27 = arith.constant 0 : index
      %47 = vector.load %arg5[%c0_24, %c1_25, %c0_26, %c0_27] : memref<1x5x8x128xf32, #tpu.memory_space<vmem>>, vector<1x1x8x128xf32>
      %48 = vector.shape_cast %47 : vector<1x1x8x128xf32> to vector<8x128xf32>
      %49 = vector.shape_cast %46 : vector<8x128xf32> to vector<1x1x8x128xf32>
      tpu.vector_store %arg5[%c0_24, %c1_25, %c0_26, %c0_27], %49 {strides = array<i32>} : memref<1x5x8x128xf32, #tpu.memory_space<vmem>>, vector<1x1x8x128xf32>,
      %c0_28 = arith.constant 0 : index
      %c2 = arith.constant 2 : index
      %c0_29 = arith.constant 0 : index
      %c0_30 = arith.constant 0 : index
      %50 = vector.load %arg5[%c0_28, %c2, %c0_29, %c0_30] : memref<1x5x8x128xf32, #tpu.memory_space<vmem>>, vector<1x1x8x128xf32>
      %51 = vector.shape_cast %50 : vector<1x1x8x128xf32> to vector<8x128xf32>
      %52 = arith.mulf %29, %29 : vector<16x128xf32>
      %53 = vector.shape_cast %52 : vector<16x128xf32> to vector<2x8x128xf32>
      %cst_31 = arith.constant dense<0.000000e+00> : vector<8x128xf32>
      %54 = vector.multi_reduction <add>, %53, %cst_31 [0] : vector<2x8x128xf32> to vector<8x128xf32>
      %55 = arith.addf %51, %54 : vector<8x128xf32>
      %c0_32 = arith.constant 0 : index
      %c2_33 = arith.constant 2 : index
      %c0_34 = arith.constant 0 : index
      %c0_35 = arith.constant 0 : index
      %56 = vector.load %arg5[%c0_32, %c2_33, %c0_34, %c0_35] : memref<1x5x8x128xf32, #tpu.memory_space<vmem>>, vector<1x1x8x128xf32>
      %57 = vector.shape_cast %56 : vector<1x1x8x128xf32> to vector<8x128xf32>
      %58 = vector.shape_cast %55 : vector<8x128xf32> to vector<1x1x8x128xf32>
      tpu.vector_store %arg5[%c0_32, %c2_33, %c0_34, %c0_35], %58 {strides = array<i32>} : memref<1x5x8x128xf32, #tpu.memory_space<vmem>>, vector<1x1x8x128xf32>,
      %c0_36 = arith.constant 0 : index
      %c3 = arith.constant 3 : index
      %c0_37 = arith.constant 0 : index
      %c0_38 = arith.constant 0 : index
      %59 = vector.load %arg5[%c0_36, %c3, %c0_37, %c0_38] : memref<1x5x8x128xf32, #tpu.memory_space<vmem>>, vector<1x1x8x128xf32>
      %60 = vector.shape_cast %59 : vector<1x1x8x128xf32> to vector<8x128xf32>
      %61 = arith.mulf %33, %33 : vector<16x128xf32>
      %62 = vector.shape_cast %61 : vector<16x128xf32> to vector<2x8x128xf32>
      %cst_39 = arith.constant dense<0.000000e+00> : vector<8x128xf32>
      %63 = vector.multi_reduction <add>, %62, %cst_39 [0] : vector<2x8x128xf32> to vector<8x128xf32>
      %64 = arith.addf %60, %63 : vector<8x128xf32>
      %c0_40 = arith.constant 0 : index
      %c3_41 = arith.constant 3 : index
      %c0_42 = arith.constant 0 : index
      %c0_43 = arith.constant 0 : index
      %65 = vector.load %arg5[%c0_40, %c3_41, %c0_42, %c0_43] : memref<1x5x8x128xf32, #tpu.memory_space<vmem>>, vector<1x1x8x128xf32>
      %66 = vector.shape_cast %65 : vector<1x1x8x128xf32> to vector<8x128xf32>
      %67 = vector.shape_cast %64 : vector<8x128xf32> to vector<1x1x8x128xf32>
      tpu.vector_store %arg5[%c0_40, %c3_41, %c0_42, %c0_43], %67 {strides = array<i32>} : memref<1x5x8x128xf32, #tpu.memory_space<vmem>>, vector<1x1x8x128xf32>,
      %c0_44 = arith.constant 0 : index
      %c4 = arith.constant 4 : index
      %c0_45 = arith.constant 0 : index
      %c0_46 = arith.constant 0 : index
      %68 = vector.load %arg5[%c0_44, %c4, %c0_45, %c0_46] : memref<1x5x8x128xf32, #tpu.memory_space<vmem>>, vector<1x1x8x128xf32>
      %69 = vector.shape_cast %68 : vector<1x1x8x128xf32> to vector<8x128xf32>
      %70 = arith.mulf %29, %33 : vector<16x128xf32>
      %71 = vector.shape_cast %70 : vector<16x128xf32> to vector<2x8x128xf32>
      %cst_47 = arith.constant dense<0.000000e+00> : vector<8x128xf32>
      %72 = vector.multi_reduction <add>, %71, %cst_47 [0] : vector<2x8x128xf32> to vector<8x128xf32>
      %73 = arith.addf %69, %72 : vector<8x128xf32>
      %c0_48 = arith.constant 0 : index
      %c4_49 = arith.constant 4 : index
      %c0_50 = arith.constant 0 : index
      %c0_51 = arith.constant 0 : index
      %74 = vector.load %arg5[%c0_48, %c4_49, %c0_50, %c0_51] : memref<1x5x8x128xf32, #tpu.memory_space<vmem>>, vector<1x1x8x128xf32>
      %75 = vector.shape_cast %74 : vector<1x1x8x128xf32> to vector<8x128xf32>
      %76 = vector.shape_cast %73 : vector<8x128xf32> to vector<1x1x8x128xf32>
      tpu.vector_store %arg5[%c0_48, %c4_49, %c0_50, %c0_51], %76 {strides = array<i32>} : memref<1x5x8x128xf32, #tpu.memory_space<vmem>>, vector<1x1x8x128xf32>,
    } else {
    }
    return
  }
  func.func @transform_0(%arg0: i32, %arg1: i32, %arg2: memref<1xi32, #tpu.memory_space<smem>>) -> (i32, i32) {
    %c1_i32 = arith.constant 1 : i32
    %0 = arith.muli %arg0, %c1_i32 : i32
    %1 = arith.addi %0, %arg1 : i32
    %c0_i32 = arith.constant 0 : i32
    %2 = arith.minsi %1, %c0_i32 : i32
    %c0_i32_0 = arith.constant 0 : i32
    %c0_i32_1 = arith.constant 0 : i32
    return %2, %c0_i32_0 : i32, i32
  }
  func.func @transform_1(%arg0: i32, %arg1: i32, %arg2: memref<1xi32, #tpu.memory_space<smem>>) -> (i32, i32) {
    %c1_i32 = arith.constant 1 : i32
    %0 = arith.muli %arg0, %c1_i32 : i32
    %1 = arith.addi %0, %arg1 : i32
    %c0_i32 = arith.constant 0 : i32
    %2 = arith.minsi %1, %c0_i32 : i32
    %c0_i32_0 = arith.constant 0 : i32
    %c0_i32_1 = arith.constant 0 : i32
    return %2, %c0_i32_0 : i32, i32
  }
  func.func @transform_2(%arg0: i32, %arg1: i32, %arg2: memref<1xi32, #tpu.memory_space<smem>>) -> (i32, i32, i32, i32) {
    %c0_i32 = arith.constant 0 : i32
    %c0_i32_0 = arith.constant 0 : i32
    %c0_i32_1 = arith.constant 0 : i32
    %c0_i32_2 = arith.constant 0 : i32
    return %arg0, %c0_i32, %c0_i32_0, %c0_i32_1 : i32, i32, i32, i32
  }
}

</mosaic_0001>

<llo_original>
// kernel: tpu_custom_call.1
$region0: #{tpu_custom_call.1}
  #allocation0 [shape = 'u32[]', space=smem, size = 0x4, offset = 0x4, fixed_abs, tag = 'smem constant byte address 0x4 - core index']
  #allocation1 [shape = 'u32[144,128]{1,0:T(1,128)}', space=vmem, size = 0x12000, scoped, tag = 'internal scratch']
  #allocation2 [shape = 's32[1]{0}', space=sflag, size = 0x4, scoped, tag = 'scoped memory for tpu_custom_call.1']
  #allocation3 [shape = 's32[1]{0:T(128)S(6)}', space=smem, size = 0x200, scoped, tag = 'prefetched SMEM operand 0']
  %s0 = inlined_call_operand.<no memory space> [shape: s32[1], index: 0, kind: input, shape index: {}]
  %s1 = inlined_call_operand.vmem [shape: f32[2,128], index: 1, kind: input, shape index: {}]
  %s2 = inlined_call_operand.vmem [shape: f32[2,128], index: 2, kind: input, shape index: {}]
  %s3 = inlined_call_operand.hbm [shape: f32[1,5,8,128], index: 3, kind: output, shape index: {}]
  %s4 = sld [smem:[#allocation0]]
  $region30: #{tpu_custom_call.1} parent=0
    _
  %s6 = ssub.s32 1, %s4
  %s7 = scalar_select 0, %s6, %s4
  %8 = sst [smem:[#allocation3]] %s0
  $region1: #{tpu_custom_call.1} parent=0
    #allocation4 [shape = 'u8[20480]{0}', space=vmem, size = 0x5000, scoped, tag = 'output window, operand 0, single buffered']
    #allocation5 [shape = 's32[1]{0}', space=sflag, size = 0x4, scoped, tag = 'scoped memory for tpu_custom_call.1']
    %9 = vsyncpa [#allocation5], 0
    // Predicated region
    $region2: #{tpu_custom_call.1} parent=1 // pred_check
      _
    $region3: #{tpu_custom_call.1} parent=1 // pred_check_branch
      %11 = sbr.rel (0) target = $region5
    $region4: #{tpu_custom_call.1} parent=1 // pred_region
      %s12 = sadd.s32 0, 0
      %p13 = scmp.lt.s32.totalorder %s12, 0
      %s14 = scalar_select %p13, %s12, 0
      %s15 = smul.u32 8, %s14
      %s16 = ssub.s32 1, %s15
      %s17 = smul.u32 32, %s16
      %p18 = scmp.lt.s32.totalorder %s15, 0
      %s19 = scalar_select %p18, %s15, 0
      %s20 = smul.addr %s19, 2
      %s21 = scalar_lea.vmem %s1, %s20
      %s22 = sadd.s32 0, 0
      %p23 = scmp.lt.s32.totalorder %s22, 0
      %s24 = scalar_select %p23, %s22, 0
      %s25 = smul.u32 8, %s24
      %s26 = ssub.s32 1, %s25
      %s27 = smul.u32 32, %s26
    $region5: #{tpu_custom_call.1} parent=1 // pred_fallthru
      _
    // Predicated region
    $region6: #{tpu_custom_call.1} parent=1 // pred_check
      _
    $region7: #{tpu_custom_call.1} parent=1 // pred_check_branch
      %29 = sbr.rel (0) target = $region9
    $region8: #{tpu_custom_call.1} parent=1 // pred_region
      %s30 = sadd.s32 0, 0
      %p31 = scmp.lt.s32.totalorder %s30, 0
      %s32 = scalar_select %p31, %s30, 0
      %s33 = smul.u32 8, %s32
      %s34 = ssub.s32 1, %s33
      %s35 = smul.u32 32, %s34
      %p36 = scmp.lt.s32.totalorder %s33, 0
      %s37 = scalar_select %p36, %s33, 0
      %s38 = smul.addr %s37, 2
      %s39 = scalar_lea.vmem %s2, %s38
      %s40 = sadd.s32 0, 0
      %p41 = scmp.lt.s32.totalorder %s40, 0
      %s42 = scalar_select %p41, %s40, 0
      %s43 = smul.u32 8, %s42
      %s44 = ssub.s32 1, %s43
      %s45 = smul.u32 32, %s44
    $region9: #{tpu_custom_call.1} parent=1 // pred_fallthru
      _
    %s46 = sadd.s32 0, 0
    %p47 = scmp.lt.s32.totalorder %s46, 0
    %s48 = scalar_select %p47, %s46, 0
    %s49 = smul.u32 8, %s48
    %s50 = ssub.s32 1, %s49
    %s51 = smul.u32 32, %s50
    %p52 = scmp.lt.s32.totalorder %s49, 0
    %s53 = scalar_select %p52, %s49, 0
    %s54 = smul.addr %s53, 2
    %s55 = scalar_lea.vmem %s1, %s54
    %s56 = sadd.s32 0, 0
    %p57 = scmp.lt.s32.totalorder %s56, 0
    %s58 = scalar_select %p57, %s56, 0
    %s59 = smul.u32 8, %s58
    %s60 = ssub.s32 1, %s59
    %s61 = smul.u32 32, %s60
    %p62 = scmp.lt.s32.totalorder %s59, 0
    %s63 = scalar_select %p62, %s59, 0
    %s64 = smul.addr %s63, 2
    %s65 = scalar_lea.vmem %s2, %s64
    %s66 = sadd.s32 0, 0
    %p67 = scmp.lt.s32.totalorder %s66, 0
    %s68 = scalar_select %p67, %s66, 0
    %s69 = smul.u32 8, %s68
    %s70 = ssub.s32 1, %s69
    %s71 = smul.u32 32, %s70
    %p72 = scmp.lt.s32.totalorder %s69, 0
    %s73 = scalar_select %p72, %s69, 0
    %s74 = smul.addr %s73, 2
    %s75 = scalar_lea.vmem %s1, %s74
    %s76 = sadd.s32 0, 0
    %p77 = scmp.lt.s32.totalorder %s76, 0
    %s78 = scalar_select %p77, %s76, 0
    %s79 = smul.u32 8, %s78
    %s80 = ssub.s32 1, %s79
    %s81 = smul.u32 32, %s80
    %s82 = sadd.s32 0, 0
    %p83 = scmp.lt.s32.totalorder %s82, 0
    %s84 = scalar_select %p83, %s82, 0
    %s85 = smul.u32 8, %s84
    %s86 = ssub.s32 1, %s85
    %s87 = smul.u32 32, %s86
    %p88 = scmp.lt.s32.totalorder %s85, 0
    %s89 = scalar_select %p88, %s85, 0
    %s90 = smul.addr %s89, 2
    %s91 = scalar_lea.vmem %s2, %s90
    %s92 = sadd.s32 0, 0
    %p93 = scmp.lt.s32.totalorder %s92, 0
    %s94 = scalar_select %p93, %s92, 0
    %s95 = smul.u32 8, %s94
    %s96 = ssub.s32 1, %s95
    %s97 = smul.u32 32, %s96
    %p98 = scmp.eq.s32.totalorder 0, 0
    // Predicated region
    $region10: #{tpu_custom_call.1} parent=1 // pred_check
      %p99 = pneg %p98
    $region11: #{tpu_custom_call.1} parent=1 // pred_check_branch
      %101 = sbr.rel (%p99) target = $region13
    $region12: #{tpu_custom_call.1} parent=1 // pred_region
      %102 = vst [vmem:[#allocation4] sm:$0xff] 0.0
      %103 = vst [vmem:[#allocation4 + $0x8] sm:$0xff] 0.0
      %104 = vst [vmem:[#allocation4 + $0x10] sm:$0xff] 0.0
      %105 = vst [vmem:[#allocation4 + $0x18] sm:$0xff] 0.0
      %106 = vst [vmem:[#allocation4 + $0x20] sm:$0xff] 0.0
    $region13: #{tpu_custom_call.1} parent=1 // pred_fallthru
      _
    %v107 = vld [vmem:[%s75] sm:$0xff]
    %v108 = vld [vmem:[%s75 + $0x8] sm:$0xff]
    %v109 = vround.ne.pseudo %v107
    %v110 = vround.ne.pseudo %v108
    %v111 = vmax.f32 %v109, 0.0
    %v112 = vmax.f32 %v110, 0.0
    %v113 = vmin.f32 %v111, 3.0
    %v114 = vmin.f32 %v112, 3.0
    %v115 = vld [vmem:[%s91] sm:$0xff]
    %v116 = vld [vmem:[%s91 + $0x8] sm:$0xff]
    %s117 = sld [smem:[#allocation3]]
    %s118 = sadd.s32 0, 0
    %s119 = smul.u32 %s118, 16
    %s120 = sadd.s32 %s119, 16
    %p121 = scmp.le.s32.totalorder %s120, %s117
    // Predicated region
    $region14: #{tpu_custom_call.1} parent=1 // pred_check
      %p122 = pneg %p121
    $region15: #{tpu_custom_call.1} parent=1 // pred_check_branch
      %124 = sbr.rel (%p122) target = $region17
    $region16: #{tpu_custom_call.1} parent=1 // pred_region
      %v125 = vld [vmem:[#allocation4] sm:$0xff]
      %v126 = vadd.f32 %v113, %v114
      %v127 = vadd.f32 %v125, %v126
      %128 = vst [vmem:[#allocation4] sm:$0xff] %v127
      %s129 = scalar_lea.vmem [#allocation4], 8
      %v130 = vld [vmem:[%s129] sm:$0xff]
      %v131 = vadd.f32 %v115, %v116
      %v132 = vadd.f32 %v130, %v131
      %133 = vst [vmem:[%s129] sm:$0xff] %v132
      %s134 = scalar_lea.vmem [#allocation4], 16
      %v135 = vld [vmem:[%s134] sm:$0xff]
      %v136 = vmul.f32 %v113, %v113
      %v137 = vmul.f32 %v114, %v114
      %v138 = vadd.f32 %v136, %v137
      %v139 = vadd.f32 %v135, %v138
      %140 = vst [vmem:[%s134] sm:$0xff] %v139
      %s141 = scalar_lea.vmem [#allocation4], 24
      %v142 = vld [vmem:[%s141] sm:$0xff]
      %v143 = vmul.f32 %v115, %v115
      %v144 = vmul.f32 %v116, %v116
      %v145 = vadd.f32 %v143, %v144
      %v146 = vadd.f32 %v142, %v145
      %147 = vst [vmem:[%s141] sm:$0xff] %v146
      %s148 = scalar_lea.vmem [#allocation4], 32
      %v149 = vld [vmem:[%s148] sm:$0xff]
      %v150 = vmul.f32 %v113, %v115
      %v151 = vmul.f32 %v114, %v116
      %v152 = vadd.f32 %v150, %v151
      %v153 = vadd.f32 %v149, %v152
      %154 = vst [vmem:[%s148] sm:$0xff] %v153
    $region17: #{tpu_custom_call.1} parent=1 // pred_fallthru
      _
    %p155 = scmp.gt.s32.totalorder %s120, %s117
    // Predicated region
    $region18: #{tpu_custom_call.1} parent=1 // pred_check
      %p156 = pneg %p155
    $region19: #{tpu_custom_call.1} parent=1 // pred_check_branch
      %158 = sbr.rel (%p156) target = $region21
    $region20: #{tpu_custom_call.1} parent=1 // pred_region
      %v159 = vlaneseq
      %v160 = vshrl.u32 %v159, 7
      %v161 = vadd.s32 %v160, 8
      %v162 = vstv %s119
      %v163 = vadd.s32 %v162, %v160
      %v164 = vadd.s32 %v162, %v161
      %v165 = vstv %s117
      %vm166 = vcmp.lt.s32.totalorder %v163, %v165
      %vm167 = vcmp.lt.s32.totalorder %v164, %v165
      %v168 = vsel %vm166, 1, 0
      %v169 = vsel %vm167, 1, 0
      %vm170 = vcmp.eq.s32.totalorder %v168, 1
      %vm171 = vcmp.eq.s32.totalorder %v169, 1
      %v172 = vsel %vm170, %v113, 0.0
      %v173 = vsel %vm171, %v114, 0.0
      %v174 = vsel %vm170, %v115, 0.0
      %v175 = vsel %vm171, %v116, 0.0
      %v176 = vld [vmem:[#allocation4] sm:$0xff]
      %v177 = vadd.f32 %v172, %v173
      %v178 = vadd.f32 %v176, %v177
      %179 = vst [vmem:[#allocation4] sm:$0xff] %v178
      %s180 = scalar_lea.vmem [#allocation4], 8
      %v181 = vld [vmem:[%s180] sm:$0xff]
      %v182 = vadd.f32 %v174, %v175
      %v183 = vadd.f32 %v181, %v182
      %184 = vst [vmem:[%s180] sm:$0xff] %v183
      %s185 = scalar_lea.vmem [#allocation4], 16
      %v186 = vld [vmem:[%s185] sm:$0xff]
      %v187 = vmul.f32 %v172, %v172
      %v188 = vmul.f32 %v173, %v173
      %v189 = vadd.f32 %v187, %v188
      %v190 = vadd.f32 %v186, %v189
      %191 = vst [vmem:[%s185] sm:$0xff] %v190
      %s192 = scalar_lea.vmem [#allocation4], 24
      %v193 = vld [vmem:[%s192] sm:$0xff]
      %v194 = vmul.f32 %v174, %v174
      %v195 = vmul.f32 %v175, %v175
      %v196 = vadd.f32 %v194, %v195
      %v197 = vadd.f32 %v193, %v196
      %198 = vst [vmem:[%s192] sm:$0xff] %v197
      %s199 = scalar_lea.vmem [#allocation4], 32
      %v200 = vld [vmem:[%s199] sm:$0xff]
      %v201 = vmul.f32 %v172, %v174
      %v202 = vmul.f32 %v173, %v175
      %v203 = vadd.f32 %v201, %v202
      %v204 = vadd.f32 %v200, %v203
      %205 = vst [vmem:[%s199] sm:$0xff] %v204
    $region21: #{tpu_custom_call.1} parent=1 // pred_fallthru
      _
    // Predicated region
    $region22: #{tpu_custom_call.1} parent=1 // pred_check
      _
    $region23: #{tpu_custom_call.1} parent=1 // pred_check_branch
      %207 = sbr.rel (0) target = $region25
    $region24: #{tpu_custom_call.1} parent=1 // pred_region
      %s209 = ssub.s32 640, 640
      %210 = vsyncadd [#allocation5], %s209
      %s211 = sshll.u32 [#allocation4], 4
      %s212 = int_to_ptr.vmem [resolvable:$true] %s211
      %217 = dma.vmem_to_hbm [thread:$0]  %s212, 640, %s3, [#allocation5], 128, 128, 8
    $region25: #{tpu_custom_call.1} parent=1 // pred_fallthru
      _
    // Predicated region
    $region26: #{tpu_custom_call.1} parent=1 // pred_check
      _
    $region27: #{tpu_custom_call.1} parent=1 // pred_check_branch
      %219 = sbr.rel (0) target = $region29
    $region28: #{tpu_custom_call.1} parent=1 // pred_region
      %220 = dma.done [#allocation5], 640
    $region29: #{tpu_custom_call.1} parent=1 // pred_fallthru
      _
    %221 = vsyncpa [#allocation5], 1

</llo_original>
